<compile_context>
chip_gen: v6e
topology: v6e:2x2x1
jax: 0.10.0
libtpu: 0.0.40
codegen_flags: <defaults>
</compile_context>

<pallas_src>
import functools

import jax
import jax.numpy as jnp
from jax.experimental import pallas as pl
from jax.experimental.pallas import tpu as pltpu

_MiB = 1024 * 1024


# --------------------------------------------------------------------------------------
# Kernels
# --------------------------------------------------------------------------------------
def _masked_softmax_over_time(e, mask, approx_recip):
    # masked_fill_(mask == 0, -inf) followed by softmax over the time axis (axis 0 here);
    # rows whose mask is entirely zero produce NaN, matching the PyTorch forward.
    e = jnp.where(mask > 0.5, e, -jnp.inf)
    m = jnp.max(e, axis=0, keepdims=True)
    p = jnp.exp(e - m)
    denom = jnp.sum(p, axis=0, keepdims=True)
    if approx_recip:
        return p * pl.reciprocal(denom, approx=True)   # EUP slot -> effectively free
    return p / denom


def _imagine_attn_dot_kernel(img_ref, dh_ref, mask_ref, wf_ref,
                             attn_ref, ctx_ref, *, approx_recip):
    """score_dot for one batch tile, fully fused.

    img_ref  : (BT, E)     image vectors (compute dtype)
    dh_ref   : (T, BT, C)  decoder hidden states, native layout, f32 straight from HBM
    mask_ref : (T, BT)     context mask (1 = keep), f32
    wf_ref   : (E, C)      fused Wemb^T @ Wctx (grid-invariant, compute dtype)
    attn_ref : (T, BT)     softmax attention weights, f32
    ctx_ref  : (BT, C)     attention-weighted context vectors, f32
    """
    dh = dh_ref[...]                                                      # (T, BT, C) f32
    v = jnp.dot(img_ref[...], wf_ref[...],
                preferred_element_type=jnp.float32)                       # (BT, C) MXU
    # e[t, b] = <v[b], dh[t, b]> : VPU multiply + lane reduction (no per-batch matmuls).
    e = jnp.sum(v[None, :, :] * dh, axis=-1)                              # (T, BT)
    p = _masked_softmax_over_time(e, mask_ref[...], approx_recip)
    attn_ref[...] = p
    # Fused attention-weighted context: dh and p are already resident in VMEM.
    ctx_ref[...] = jnp.sum(p[:, :, None] * dh, axis=0)                    # (BT, C)


def _imagine_attn_mlp_kernel(img_ref, dh_ref, mask_ref, wembt_ref, wctxt_ref, wmlp_ref,
                             attn_ref, ctx_ref, *, approx_recip, tanh_dtype):
    """score_mlp for one batch tile: a single (T*BT, C) @ (C, C) MXU matmul."""
    t, bt, c = dh_ref.shape
    c_out = wctxt_ref.shape[1]
    dh = dh_ref[...]                                                      # (T, BT, C) f32
    dh_c = dh.astype(wctxt_ref.dtype)                                     # MXU input dtype
    im_ = jnp.dot(img_ref[...], wembt_ref[...],
                  preferred_element_type=jnp.float32)                     # (BT, C)
    ctx = jnp.dot(dh_c.reshape(t * bt, c), wctxt_ref[...],
                  preferred_element_type=jnp.float32).reshape(t, bt, c_out)
    h = jnp.tanh((ctx + im_[None, :, :]).astype(tanh_dtype))              # EUP tanh
    e = jnp.sum(h * wmlp_ref[...][None, :, :], axis=-1)                   # (T, BT), f32 (wmlp f32)
    p = _masked_softmax_over_time(e, mask_ref[...], approx_recip)
    attn_ref[...] = p
    ctx_ref[...] = jnp.sum(p[:, :, None] * dh, axis=0)                    # (BT, C)


# --------------------------------------------------------------------------------------
# Hardware detection + tiling heuristic
# --------------------------------------------------------------------------------------
def _detect_tpu():
    """Returns (per-core VMEM bytes, TensorCores per chip) with conservative fallbacks."""
    kind = ""
    try:
        kind = (jax.devices()[0].device_kind or "").lower()
    except Exception:
        pass
    vmem = None
    try:
        vmem = int(pltpu.get_tpu_info().vmem_capacity_bytes)
    except Exception:
        vmem = None
    if vmem is None:
        if "v2" in kind or "v3" in kind:
            vmem = 16 * _MiB
        elif "v7" in kind or "7x" in kind:
            vmem = 64 * _MiB                      # v7x: 64 MiB per TensorCore
        elif kind:
            vmem = 128 * _MiB                     # v4 / v5e / v5p / v6e
        else:
            vmem = 64 * _MiB                      # unknown: be conservative
    cores = 2 if ("v7" in kind or "7x" in kind) else 1
    return vmem, cores


def _choose_batch_tile(batch, seq_len, ctx_size, emb_size, elem_bytes,
                       weight_bytes, vmem_bytes, cores):
    """Pick (batch tile BT, padded batch, scoped-VMEM limit to request)."""
    vmem_limit = (vmem_bytes * 3) // 4            # leave headroom for Mosaic internal scratch
    # Block budget: ~55% of the scoped limit minus the (double-buffered) resident weights.
    budget = max((vmem_limit * 11) // 20 - 2 * weight_bytes, 2 * _MiB)
    per_row = (2 * seq_len * ctx_size * 4         # double-buffered f32 dh block
               + 3 * seq_len * ctx_size * 4       # in-kernel temporaries (ctx / tanh / products)
               + 2 * emb_size * elem_bytes        # img block
               + 4 * seq_len * 4                  # mask + attention-output blocks
               + 2 * ctx_size * 4)                # fused-context output block
    bt_max = max(8, budget // max(per_row, 1))
    # Small batches: one tile covers everything (block dims == full dims -> always legal).
    if batch <= bt_max and (cores == 1 or batch < 2 * 128):
        return batch, batch, vmem_limit
    bt = min(int(bt_max), -(-batch // max(cores, 1)))
    if bt >= 256:
        bt = (bt // 256) * 256                    # fill the 256-wide MXU M dim (v6e / v7x)
    else:
        bt = max(128, (bt // 128) * 128)          # hard lane-alignment floor for (T, BT) blocks
    b_pad = -(-batch // bt) * bt
    return bt, b_pad, vmem_limit


# --------------------------------------------------------------------------------------
# Weight preparation (done ONCE at weight-load time, not per forward step)
# --------------------------------------------------------------------------------------
def prepare_imagine_attn_weights(params, method, compute_dtype=jnp.bfloat16):
    """Kernel-ready weights.  dot: Wf = emb2ctx^T @ ctx2ctx (HIGHEST precision) so the
    per-step B*T*C^2 ctx2ctx matmul disappears; mlp: weights pre-transposed to (in, out)."""
    hp = jax.lax.Precision.HIGHEST
    if method == "dot":
        wf = jnp.matmul(params["emb2ctx"].T, params["ctx2ctx"], precision=hp)   # (E, C)
        return {"wf": wf.astype(compute_dtype)}
    if method == "mlp":
        return {"wembt": params["emb2ctx"].T.astype(compute_dtype),             # (E, C)
                "wctxt": params["ctx2ctx"].T.astype(compute_dtype),             # (C, C)
                "wmlp": params["mlp"].astype(jnp.float32)}                      # (1, C)
    raise ValueError(f"unknown method {method!r}")


# --------------------------------------------------------------------------------------
# ImagineAttn.forward (+ fused attention-weighted context) wrapper
# --------------------------------------------------------------------------------------
@functools.partial(jax.jit, static_argnames=("method", "compute_dtype"))
def imagine_attn_forward(image_vec, decoder_hidden, weights, ctx_mask=None, *,
                         method="dot", compute_dtype=jnp.bfloat16):
    """image_vec: (B, E); decoder_hidden: (T, B, C); ctx_mask: (T, B) 1=keep / 0=mask or None.
    Returns (attn (B, 1, T), context (B, C)) where context = attn . decoder_hidden."""
    B, E = image_vec.shape
    T, B2, C = decoder_hidden.shape
    assert B == B2

    elem_bytes = jnp.dtype(compute_dtype).itemsize
    weight_bytes = sum(int(w.size) * w.dtype.itemsize for w in weights.values())
    vmem_bytes, cores = _detect_tpu()
    BT, B_pad, vmem_limit = _choose_batch_tile(B, T, C, E, elem_bytes,
                                               weight_bytes, vmem_bytes, cores)
    n_tiles = B_pad // BT

    # ---- layout / dtype plumbing (decoder_hidden stays in its native layout) ----------
    img = image_vec.astype(compute_dtype)                    # (B, E), tiny cast
    dh = decoder_hidden.astype(jnp.float32)                  # (T, B, C) native; no relayout pass
    if ctx_mask is None:
        mask = jnp.ones((T, B), jnp.float32)
    else:
        mask = ctx_mask.astype(jnp.float32)                  # (T, B)
    if B_pad != B:                                           # only for multi-tile grids
        img = jnp.pad(img, ((0, B_pad - B), (0, 0)))
        dh = jnp.pad(dh, ((0, 0), (0, B_pad - B), (0, 0)))
        mask = jnp.pad(mask, ((0, 0), (0, B_pad - B)), constant_values=1.0)  # pads stay NaN-free
    # No T padding needed: T is a leading block dim (unconstrained); the only in-kernel
    # reshape collapses (T, BT, C) -> (T*BT, C), free once BT is sublane-aligned.

    approx = compute_dtype == jnp.bfloat16
    if method == "dot":
        wlist = [weights["wf"]]
        kernel = functools.partial(_imagine_attn_dot_kernel, approx_recip=approx)
        flops = 2 * B_pad * E * C + 4 * T * B_pad * C + 8 * T * B_pad
        trans = T * B_pad + B_pad
    elif method == "mlp":
        wlist = [weights["wembt"], weights["wctxt"], weights["wmlp"]]
        tanh_dtype = jnp.bfloat16 if compute_dtype == jnp.bfloat16 else jnp.float32
        kernel = functools.partial(_imagine_attn_mlp_kernel, approx_recip=approx,
                                   tanh_dtype=tanh_dtype)
        flops = 2 * B_pad * E * C + 2 * T * B_pad * C * C + 6 * T * B_pad * C + 8 * T * B_pad
        trans = T * B_pad * C + T * B_pad + B_pad
    else:
        raise ValueError(f"unknown method {method!r}")

    def _const_spec(w):
        # Grid-invariant weights: constant index_map, DMA'd into VMEM only once.
        # TODO(synk): pipeline_mode=pl.Buffered(1) would drop the dead 2nd weight buffer on v7x.
        nd = w.ndim
        return pl.BlockSpec(w.shape, lambda i, nd=nd: (0,) * nd)

    in_specs = [
        pl.BlockSpec((BT, E), lambda i: (i, 0)),             # image vectors (batch tile)
        pl.BlockSpec((T, BT, C), lambda i: (0, i, 0)),       # decoder hidden, native (T, B, C)
        pl.BlockSpec((T, BT), lambda i: (0, i)),             # context mask, native (T, B)
    ] + [_const_spec(w) for w in wlist]

    args = [img, dh, mask] + wlist
    bytes_accessed = int(sum(int(a.size) * a.dtype.itemsize for a in args)
                         + T * B_pad * 4 + B_pad * C * 4)

    # v7x has 2 TensorCores per chip: split the independent batch tiles across them.
    if cores > 1 and n_tiles >= 2:
        dim_sem = (pltpu.CORE_PARALLEL,)
    else:
        dim_sem = ("parallel",)

    attn_tb, context = pl.pallas_call(
        kernel,
        out_shape=(jax.ShapeDtypeStruct((T, B_pad), jnp.float32),
                   jax.ShapeDtypeStruct((B_pad, C), jnp.float32)),
        grid=(n_tiles,),
        in_specs=in_specs,
        out_specs=(pl.BlockSpec((T, BT), lambda i: (0, i)),
                   pl.BlockSpec((BT, C), lambda i: (i, 0))),
        compiler_params=pltpu.CompilerParams(
            dimension_semantics=dim_sem,
            vmem_limit_bytes=int(vmem_limit)),
        cost_estimate=pl.CostEstimate(flops=int(flops), transcendentals=int(trans),
                                      bytes_accessed=bytes_accessed),
    )(*args)

    attn = jnp.transpose(attn_tb[:, :B], (1, 0)).reshape(B, 1, T)
    return attn, context[:B]


# --------------------------------------------------------------------------------------
# VSE_Imagine_Text module-level path (plain JAX around the fused Pallas kernel)
# --------------------------------------------------------------------------------------
def l2norm(x, eps=1e-12):
    return x / (jnp.linalg.norm(x, axis=-1, keepdims=True) + eps)


def vse_get_emb_vec(im_var, decoder_hiddens, params, ctx_mask=None, method="dot",
                    compute_dtype=jnp.bfloat16, attn_weights=None):
    """Mirrors VSE_Imagine_Text.get_emb_vec (dropout = 0, activation_vse = True).
    The attention-weighted context is produced inside the kernel, so decoder_hiddens
    is read from HBM exactly once."""
    im_emb = jnp.tanh(im_var @ params["im_embedding_w"].T + params["im_embedding_b"])
    im_emb = l2norm(im_emb)
    w = attn_weights if attn_weights is not None else \
        prepare_imagine_attn_weights(params, method, compute_dtype)
    _, context = imagine_attn_forward(im_emb, decoder_hiddens, w, ctx_mask,
                                      method=method, compute_dtype=compute_dtype)
    # TODO(synk): criterion_vse (the VSE loss) is an external callable and stays outside.
    return im_emb, l2norm(context)


# --------------------------------------------------------------------------------------
# Parameters + plain-JAX reference
# --------------------------------------------------------------------------------------
def init_params(key, context_size, shared_embedding_size, im_size=None, method="dot"):
    k1, k2, k3, k4, k5 = jax.random.split(key, 5)
    params = {
        "ctx2ctx": jax.random.normal(k1, (context_size, context_size), jnp.float32) * 0.1,
        "emb2ctx": jax.random.normal(k2, (context_size, shared_embedding_size), jnp.float32) * 0.1,
    }
    if method == "mlp":
        params["mlp"] = jax.random.normal(k3, (1, context_size), jnp.float32) * 0.1
    if im_size is not None:
        params["im_embedding_w"] = (
            jax.random.normal(k4, (shared_embedding_size, im_size), jnp.float32) * 0.1)
        params["im_embedding_b"] = (
            jax.random.normal(k5, (shared_embedding_size,), jnp.float32) * 0.1)
    return params


def _reference(image_vec, decoder_hidden, params, ctx_mask, method):
    """Plain-JAX reference reproducing the PyTorch ImagineAttn.forward."""
    hp = jax.lax.Precision.HIGHEST
    dh = jnp.transpose(decoder_hidden, (1, 0, 2))                         # (B, T, C)
    im = image_vec[:, None, :]                                            # (B, 1, E)
    ctx_ = jnp.einsum("btc,dc->btd", dh, params["ctx2ctx"], precision=hp)
    im_ = jnp.einsum("bie,ce->bic", im, params["emb2ctx"], precision=hp)
    if method == "dot":
        e = jnp.einsum("bic,btc->bit", im_, ctx_, precision=hp)           # (B, 1, T)
    else:
        h = jnp.tanh(ctx_ + im_)
        e = jnp.einsum("btc,oc->bot", h, params["mlp"], precision=hp)     # (B, 1, T)
    if ctx_mask is not None:
        keep = jnp.transpose(ctx_mask, (1, 0))[:, None, :] > 0.5
        e = jnp.where(keep, e, -jnp.inf)
    return jax.nn.softmax(e, axis=-1)


# --------------------------------------------------------------------------------------
if __name__ == "__main__":
    B, T, E, C, IM = 2, 8, 32, 32, 64   # batch, seq, shared_embedding, context/hidden, im_size

    key = jax.random.PRNGKey(0)
    k_img, k_dh, k_im, k_p = jax.random.split(key, 4)

    image_vec = jax.random.normal(k_img, (B, E), jnp.float32)             # (B, E)
    decoder_hidden = jax.random.normal(k_dh, (T, B, C), jnp.float32)      # (T, B, C)
    im_var = jax.random.normal(k_im, (B, IM), jnp.float32)                # (B, D_im)
    # ctx_mask (T, B): 1 = valid, 0 = masked; keep several valid steps per batch row.
    ctx_mask = jnp.ones((T, B), jnp.float32).at[T - 2:, :].set(0.0)

    # f32 path tolerance covers TPU matmul-precision defaults; bf16 path covers bf16 rounding.
    tols = {jnp.float32: 1e-2, jnp.bfloat16: 3e-2}
    hp = jax.lax.Precision.HIGHEST
    ok = True
    for method in ("dot", "mlp"):
        params = init_params(k_p, C, E, im_size=IM, method=method)
        ref_attn = _reference(image_vec, decoder_hidden, params, ctx_mask, method)

        for dtype, tol in tols.items():
            w = prepare_imagine_attn_weights(params, method, dtype)
            attn, ctx = imagine_attn_forward(image_vec, decoder_hidden, w, ctx_mask,
                                             method=method, compute_dtype=dtype)
            attn, ctx = jax.block_until_ready((attn, ctx))
            if attn.shape != (B, 1, T) or not jnp.allclose(attn, ref_attn, atol=tol, rtol=tol):
                ok = False
            # The fused context output must match attn . decoder_hidden (both f32 inside).
            ctx_ref = jnp.einsum("bit,tbc->bc", attn, decoder_hidden, precision=hp)
            if ctx.shape != (B, C) or not jnp.allclose(ctx, ctx_ref, atol=1e-4, rtol=1e-4):
                ok = False

        # Module-level path (VSE_Imagine_Text.get_emb_vec, dropout=0) using the same kernel.
        im_emb, txt_emb = jax.block_until_ready(
            vse_get_emb_vec(im_var, decoder_hidden, params, ctx_mask=ctx_mask, method=method))
        norms_ok = bool(jnp.allclose(jnp.linalg.norm(im_emb, axis=-1), 1.0, atol=1e-3)) and \
                   bool(jnp.allclose(jnp.linalg.norm(txt_emb, axis=-1), 1.0, atol=1e-3))
        if (im_emb.shape != (B, E) or txt_emb.shape != (B, C) or not norms_ok
                or not bool(jnp.all(jnp.isfinite(txt_emb)))):
            ok = False

    if ok:
        print("KERNEL_OK")
</pallas_src>

<mosaic_0001>
module attributes {stable_mosaic.version = 11 : i64} {
  func.func @_imagine_attn_dot_kernel(%arg0: i32, %arg1: memref<2x32xf32, #tpu.memory_space<vmem>>, %arg2: memref<8x2x32xf32, #tpu.memory_space<vmem>>, %arg3: memref<8x2xf32, #tpu.memory_space<vmem>>, %arg4: memref<32x32xf32, #tpu.memory_space<vmem>>, %arg5: memref<8x2xf32, #tpu.memory_space<vmem>>, %arg6: memref<2x32xf32, #tpu.memory_space<vmem>>) attributes {dimension_semantics = [#tpu.dimension_semantics<parallel>], iteration_bounds = array<i64: 1>, scalar_prefetch = 0 : i64, scratch_operands = 0 : i64, tpu.core_type = #tpu.core_type<tc>, window_params = [{transform_indices = @transform_0, window_bounds = array<i64: 2, 32>}, {transform_indices = @transform_1, window_bounds = array<i64: 8, 2, 32>}, {transform_indices = @transform_2, window_bounds = array<i64: 8, 2>}, {pipeline_mode = #tpu.pipeline_mode<synchronous>, transform_indices = @transform_3, window_bounds = array<i64: 32, 32>}, {transform_indices = @transform_4, window_bounds = array<i64: 8, 2>}, {transform_indices = @transform_5, window_bounds = array<i64: 2, 32>}]} {
    %c0 = arith.constant 0 : index
    %c0_0 = arith.constant 0 : index
    %c0_1 = arith.constant 0 : index
    %0 = vector.load %arg2[%c0, %c0_0, %c0_1] : memref<8x2x32xf32, #tpu.memory_space<vmem>>, vector<8x2x32xf32>
    %c0_2 = arith.constant 0 : index
    %c0_3 = arith.constant 0 : index
    %1 = vector.load %arg1[%c0_2, %c0_3] : memref<2x32xf32, #tpu.memory_space<vmem>>, vector<2x32xf32>
    %c0_4 = arith.constant 0 : index
    %c0_5 = arith.constant 0 : index
    %2 = vector.load %arg4[%c0_4, %c0_5] : memref<32x32xf32, #tpu.memory_space<vmem>>, vector<32x32xf32>
    %cst = arith.constant dense<0.000000e+00> : vector<2x32xf32>
    %3 = tpu.matmul %1, %2, %cst {dimension_numbers = #tpu.dot_dimension_numbers<[1], [0], [0], [1], [0, 0, 1, 1], [], []>} : vector<2x32xf32>, vector<32x32xf32>, vector<2x32xf32> -> vector<2x32xf32>
    %4 = vector.shape_cast %3 : vector<2x32xf32> to vector<1x2x32xf32>
    %5 = vector.broadcast %4 : vector<1x2x32xf32> to vector<8x2x32xf32>
    %6 = arith.mulf %5, %0 : vector<8x2x32xf32>
    %cst_6 = arith.constant dense<0.000000e+00> : vector<8x2xf32>
    %7 = vector.multi_reduction <add>, %6, %cst_6 [2] : vector<8x2x32xf32> to vector<8x2xf32>
    %c0_7 = arith.constant 0 : index
    %c0_8 = arith.constant 0 : index
    %8 = vector.load %arg3[%c0_7, %c0_8] : memref<8x2xf32, #tpu.memory_space<vmem>>, vector<8x2xf32>
    %cst_9 = arith.constant 5.000000e-01 : f32
    %9 = vector.broadcast %cst_9 : f32 to vector<8x2xf32>
    %10 = arith.cmpf ogt, %8, %9 : vector<8x2xf32>
    %cst_10 = arith.constant 0xFF800000 : f32
    %11 = vector.broadcast %cst_10 : f32 to vector<8x2xf32>
    %12 = arith.select %10, %7, %11 : vector<8x2xi1>, vector<8x2xf32>
    %cst_11 = arith.constant dense<0xFF800000> : vector<2xf32>
    %13 = vector.multi_reduction <maximumf>, %12, %cst_11 [0] : vector<8x2xf32> to vector<2xf32>
    %14 = vector.shape_cast %13 : vector<2xf32> to vector<1x2xf32>
    %15 = vector.broadcast %14 : vector<1x2xf32> to vector<8x2xf32>
    %16 = arith.subf %12, %15 : vector<8x2xf32>
    %17 = math.exp %16 : vector<8x2xf32>
    %cst_12 = arith.constant dense<0.000000e+00> : vector<2xf32>
    %18 = vector.multi_reduction <add>, %17, %cst_12 [0] : vector<8x2xf32> to vector<2xf32>
    %19 = vector.shape_cast %18 : vector<2xf32> to vector<1x2xf32>
    %20 = vector.broadcast %19 : vector<1x2xf32> to vector<8x2xf32>
    %21 = arith.divf %17, %20 : vector<8x2xf32>
    %c0_13 = arith.constant 0 : index
    %c0_14 = arith.constant 0 : index
    %22 = vector.load %arg5[%c0_13, %c0_14] : memref<8x2xf32, #tpu.memory_space<vmem>>, vector<8x2xf32>
    tpu.vector_store %arg5[%c0_13, %c0_14], %21 {strides = array<i32>} : memref<8x2xf32, #tpu.memory_space<vmem>>, vector<8x2xf32>,
    %23 = vector.shape_cast %21 : vector<8x2xf32> to vector<8x2x1xf32>
    %24 = vector.broadcast %23 : vector<8x2x1xf32> to vector<8x2x32xf32>
    %25 = arith.mulf %24, %0 : vector<8x2x32xf32>
    %cst_15 = arith.constant dense<0.000000e+00> : vector<2x32xf32>
    %26 = vector.multi_reduction <add>, %25, %cst_15 [0] : vector<8x2x32xf32> to vector<2x32xf32>
    %c0_16 = arith.constant 0 : index
    %c0_17 = arith.constant 0 : index
    %27 = vector.load %arg6[%c0_16, %c0_17] : memref<2x32xf32, #tpu.memory_space<vmem>>, vector<2x32xf32>
    tpu.vector_store %arg6[%c0_16, %c0_17], %26 {strides = array<i32>} : memref<2x32xf32, #tpu.memory_space<vmem>>, vector<2x32xf32>,
    return
  }
  func.func @transform_0(%arg0: i32) -> (i32, i32) {
    %c0_i32 = arith.constant 0 : i32
    %c0_i32_0 = arith.constant 0 : i32
    return %arg0, %c0_i32 : i32, i32
  }
  func.func @transform_1(%arg0: i32) -> (i32, i32, i32) {
    %c0_i32 = arith.constant 0 : i32
    %c0_i32_0 = arith.constant 0 : i32
    %c0_i32_1 = arith.constant 0 : i32
    return %c0_i32, %arg0, %c0_i32_0 : i32, i32, i32
  }
  func.func @transform_2(%arg0: i32) -> (i32, i32) {
    %c0_i32 = arith.constant 0 : i32
    %c0_i32_0 = arith.constant 0 : i32
    return %c0_i32, %arg0 : i32, i32
  }
  func.func @transform_3(%arg0: i32) -> (i32, i32) {
    %c0_i32 = arith.constant 0 : i32
    %c0_i32_0 = arith.constant 0 : i32
    %c0_i32_1 = arith.constant 0 : i32
    return %c0_i32, %c0_i32_0 : i32, i32
  }
  func.func @transform_4(%arg0: i32) -> (i32, i32) {
    %c0_i32 = arith.constant 0 : i32
    %c0_i32_0 = arith.constant 0 : i32
    return %c0_i32, %arg0 : i32, i32
  }
  func.func @transform_5(%arg0: i32) -> (i32, i32) {
    %c0_i32 = arith.constant 0 : i32
    %c0_i32_0 = arith.constant 0 : i32
    return %arg0, %c0_i32 : i32, i32
  }
}

</mosaic_0001>

<llo_original>
// kernel: imagine_attn_forward.1
$region0: #{imagine_attn_forward.1}
  #allocation0 [shape = 'u32[]', space=smem, size = 0x4, offset = 0x4, fixed_abs, tag = 'smem constant byte address 0x4 - core index']
  #allocation1 [shape = 'u32[144,128]{1,0:T(1,128)}', space=vmem, size = 0x12000, scoped, tag = 'internal scratch']
  %s0 = inlined_call_operand.vmem [shape: f32[2,32], index: 0, kind: input, shape index: {}]
  %s1 = inlined_call_operand.hbm [shape: f32[8,2,32], index: 1, kind: input, shape index: {}]
  %s2 = inlined_call_operand.vmem [shape: f32[8,2], index: 2, kind: input, shape index: {}]
  %s3 = inlined_call_operand.hbm [shape: f32[32,32], index: 3, kind: input, shape index: {}]
  %s4 = inlined_call_operand.vmem [shape: f32[8,2], index: 4, kind: output, shape index: {0}]
  %s5 = inlined_call_operand.hbm [shape: f32[2,32], index: 5, kind: output, shape index: {1}]
  %6 = xla_tuple %s4, %s5
  %s7 = sld [smem:[#allocation0]]
  $region42: #{imagine_attn_forward.1} parent=0
    _
  %s9 = ssub.s32 1, %s7
  %s10 = scalar_select 0, %s9, %s7
  $region1: #{imagine_attn_forward.1} parent=0
    #allocation2 [shape = 'u8[8192]{0}', space=vmem, size = 0x2000, scoped, tag = 'input window, operand 1, single buffered']
    #allocation3 [shape = 's32[1]{0}', space=sflag, size = 0x4, scoped, tag = 'scoped memory for imagine_attn_forward.1']
    #allocation4 [shape = 's32[1]{0}', space=sflag, size = 0x4, scoped, tag = 'scoped memory for imagine_attn_forward.1']
    #allocation5 [shape = 'u8[16384]{0}', space=vmem, size = 0x4000, scoped, tag = 'input window, operand 3, single buffered']
    #allocation6 [shape = 's32[1]{0}', space=sflag, size = 0x4, scoped, tag = 'scoped memory for imagine_attn_forward.1']
    #allocation7 [shape = 'u8[1024]{0}', space=vmem, size = 0x400, scoped, tag = 'output window, operand 1, single buffered']
    %11 = vsyncpa [#allocation3], 0
    %12 = vsyncpa [#allocation6], 0
    %13 = vsyncpa [#allocation4], 0
    // Predicated region
    $region2: #{imagine_attn_forward.1} parent=1 // pred_check
      _
    $region3: #{imagine_attn_forward.1} parent=1 // pred_check_branch
      %15 = sbr.rel (0) target = $region5
    $region4: #{imagine_attn_forward.1} parent=1 // pred_region
      _
    $region5: #{imagine_attn_forward.1} parent=1 // pred_fallthru
      _
    // Predicated region
    $region6: #{imagine_attn_forward.1} parent=1 // pred_check
      _
    $region7: #{imagine_attn_forward.1} parent=1 // pred_check_branch
      %17 = sbr.rel (0) target = $region9
    $region8: #{imagine_attn_forward.1} parent=1 // pred_region
      %s19 = ssub.s32 256, 256
      %20 = vsyncadd [#allocation3], %s19
      %s21 = sshll.u32 [#allocation2], 4
      %s22 = int_to_ptr.vmem [resolvable:$true] %s21
      %27 = dma.hbm_to_vmem [thread:$0]  %s1, 256, %s22, [#allocation3], 32, 32, 2
    $region9: #{imagine_attn_forward.1} parent=1 // pred_fallthru
      _
    // Predicated region
    $region10: #{imagine_attn_forward.1} parent=1 // pred_check
      _
    $region11: #{imagine_attn_forward.1} parent=1 // pred_check_branch
      %29 = sbr.rel (0) target = $region13
    $region12: #{imagine_attn_forward.1} parent=1 // pred_region
      _
    $region13: #{imagine_attn_forward.1} parent=1 // pred_fallthru
      _
    // Predicated region
    $region14: #{imagine_attn_forward.1} parent=1 // pred_check
      _
    $region15: #{imagine_attn_forward.1} parent=1 // pred_check_branch
      %31 = sbr.rel (0) target = $region17
    $region16: #{imagine_attn_forward.1} parent=1 // pred_region
      %s33 = ssub.s32 512, 512
      %34 = vsyncadd [#allocation6], %s33
      %s35 = sshll.u32 [#allocation5], 4
      %s36 = int_to_ptr.vmem [resolvable:$true] %s35
      %41 = dma.hbm_to_vmem [thread:$0]  %s3, 512, %s36, [#allocation6], 128, 128, 8
    $region17: #{imagine_attn_forward.1} parent=1 // pred_fallthru
      _
    // Predicated region
    $region18: #{imagine_attn_forward.1} parent=1 // pred_check
      _
    $region19: #{imagine_attn_forward.1} parent=1 // pred_check_branch
      %43 = sbr.rel (0) target = $region21
    $region20: #{imagine_attn_forward.1} parent=1 // pred_region
      %44 = dma.done [#allocation3], 256
    $region21: #{imagine_attn_forward.1} parent=1 // pred_fallthru
      _
    // Predicated region
    $region22: #{imagine_attn_forward.1} parent=1 // pred_check
      _
    $region23: #{imagine_attn_forward.1} parent=1 // pred_check_branch
      %46 = sbr.rel (0) target = $region25
    $region24: #{imagine_attn_forward.1} parent=1 // pred_region
      %47 = dma.done [#allocation6], 512
    $region25: #{imagine_attn_forward.1} parent=1 // pred_fallthru
      _
    %v48 = vld [vmem:[#allocation2] sm:$0x3]
    %v49 = vld [vmem:[#allocation2 + $0x2] sm:$0x3]
    %v50 = vld [vmem:[#allocation2 + $0x4] sm:$0x3]
    %v51 = vld [vmem:[#allocation2 + $0x6] sm:$0x3]
    %v52 = vld [vmem:[#allocation2 + $0x8] sm:$0x3]
    %v53 = vld [vmem:[#allocation2 + $0xa] sm:$0x3]
    %v54 = vld [vmem:[#allocation2 + $0xc] sm:$0x3]
    %v55 = vld [vmem:[#allocation2 + $0xe] sm:$0x3]
    %v56 = vld [vmem:[%s0] sm:$0x3]
    %v57 = vld [vmem:[#allocation5] sm:$0xff]
    %v58 = vld [vmem:[#allocation5 + $0x8] sm:$0xff]
    %v59 = vld [vmem:[#allocation5 + $0x10] sm:$0xff]
    %v60 = vld [vmem:[#allocation5 + $0x18] sm:$0xff]
    %vm61 = vcmask 261120
    %v63 = vsel %vm61, %v56, 0
    %65 = vmatprep.subr.mxu0 0.0
    %66 = vmatpush1.msra.mxu0 0.0
    %67 = vmatprep.subr.mxu0 0.0
    %68 = vmatpush1.msra.mxu0 0.0
    %69 = vmatprep.subr.mxu0 0.0
    %70 = vmatpush1.msra.mxu0 0.0
    %71 = vmatprep.subr.mxu0 0.0
    %72 = vmatpush1.msra.mxu0 0.0
    %73 = vmatprep.subr.mxu0 0.0
    %74 = vmatpush1.msra.mxu0 0.0
    %75 = vmatprep.subr.mxu0 0.0
    %76 = vmatpush1.msra.mxu0 0.0
    %77 = vmatprep.subr.mxu0 0.0
    %78 = vmatpush1.msra.mxu0 0.0
    %79 = vmatprep.subr.mxu0 0.0
    %80 = vmatpush1.msra.mxu0 0.0
    %81 = vmatprep.subr.mxu0 0.0
    %82 = vmatpush1.msra.mxu0 0.0
    %83 = vmatprep.subr.mxu0 0.0
    %84 = vmatpush1.msra.mxu0 0.0
    %85 = vmatprep.subr.mxu0 0.0
    %86 = vmatpush1.msra.mxu0 0.0
    %87 = vmatprep.subr.mxu0 0.0
    %88 = vmatpush1.msra.mxu0 0.0
    %89 = vmatprep.subr.mxu0 0.0
    %90 = vmatpush1.msra.mxu0 %v60
    %91 = vmatprep.subr.mxu0 0.0
    %92 = vmatpush1.msra.mxu0 %v59
    %93 = vmatprep.subr.mxu0 0.0
    %94 = vmatpush1.msra.mxu0 %v58
    %95 = vmatprep.subr.mxu0 0.0
    %96 = vmatpush1.msra.mxu0 %v57
    %97 = vmatprep.subr.mxu0 0.0
    %98 = vmatpush2.msra.mxu0 0.0
    %99 = vmatprep.subr.mxu0 0.0
    %100 = vmatpush2.msra.mxu0 0.0
    %101 = vmatprep.subr.mxu0 0.0
    %102 = vmatpush2.msra.mxu0 0.0
    %103 = vmatprep.subr.mxu0 0.0
    %104 = vmatpush2.msra.mxu0 0.0
    %105 = vmatprep.subr.mxu0 0.0
    %106 = vmatpush2.msra.mxu0 0.0
    %107 = vmatprep.subr.mxu0 0.0
    %108 = vmatpush2.msra.mxu0 0.0
    %109 = vmatprep.subr.mxu0 0.0
    %110 = vmatpush2.msra.mxu0 0.0
    %111 = vmatprep.subr.mxu0 0.0
    %112 = vmatpush2.msra.mxu0 0.0
    %113 = vmatprep.subr.mxu0 0.0
    %114 = vmatpush2.msra.mxu0 0.0
    %115 = vmatprep.subr.mxu0 0.0
    %116 = vmatpush2.msra.mxu0 0.0
    %117 = vmatprep.subr.mxu0 0.0
    %118 = vmatpush2.msra.mxu0 0.0
    %119 = vmatprep.subr.mxu0 0.0
    %120 = vmatpush2.msra.mxu0 0.0
    %121 = vmatprep.subr.mxu0 0.0
    %122 = vmatpush2.msra.mxu0 0.0
    %123 = vmatprep.subr.mxu0 0.0
    %124 = vmatpush2.msra.mxu0 0.0
    %125 = vmatprep.subr.mxu0 0.0
    %126 = vmatpush2.msra.mxu0 0.0
    %127 = vmatprep.subr.mxu0 0.0
    %128 = vmatpush2.msra.mxu0 0.0
    %129 = vmatprep.mubr.f32.mxu0 0.0
    %130 = vmatmul.mubr.f32.gmra.mxu0 %v63
    %v131 = vpop.f32.mrf.mxu0
    %v132 = vadd.f32 0.0, %v131
    %v133 = vpop.f32.mrf.mxu0
    %134 = vdwg.mxu0
    %v135 = vmul.f32 %v132, %v48
    %v136 = vmul.f32 %v132, %v49
    %v137 = vmul.f32 %v132, %v50
    %v138 = vmul.f32 %v132, %v51
    %v139 = vmul.f32 %v132, %v52
    %v140 = vmul.f32 %v132, %v53
    %v141 = vmul.f32 %v132, %v54
    %v142 = vmul.f32 %v132, %v55
    %vm143 = vcmask 254976
    %v144 = vsel %vm143, %v135, 0.0
    %145 = vadd.xlane.f32.xlu0 %v144
    %v146 = vpop.xlane.xlu0 %145
    %v147 = vsel %vm143, %v136, 0.0
    %148 = vadd.xlane.f32.xlu0 %v147
    %v149 = vpop.xlane.xlu0 %148
    %v150 = vsel %vm143, %v137, 0.0
    %151 = vadd.xlane.f32.xlu0 %v150
    %v152 = vpop.xlane.xlu0 %151
    %v153 = vsel %vm143, %v138, 0.0
    %154 = vadd.xlane.f32.xlu0 %v153
    %v155 = vpop.xlane.xlu0 %154
    %v156 = vsel %vm143, %v139, 0.0
    %157 = vadd.xlane.f32.xlu0 %v156
    %v158 = vpop.xlane.xlu0 %157
    %v159 = vsel %vm143, %v140, 0.0
    %160 = vadd.xlane.f32.xlu0 %v159
    %v161 = vpop.xlane.xlu0 %160
    %v162 = vsel %vm143, %v141, 0.0
    %163 = vadd.xlane.f32.xlu0 %v162
    %v164 = vpop.xlane.xlu0 %163
    %v165 = vsel %vm143, %v142, 0.0
    %166 = vadd.xlane.f32.xlu0 %v165
    %v167 = vpop.xlane.xlu0 %166
    %v168 = vld [vmem:[%s2] sm:$0xff]
    %vm169 = vcmp.gt.f32.partialorder %v168, 0.5
    %v178 = vlaneseq
    %v179 = vand.u32 %v178, 127
    %v180 = vlaneseq
    %v181 = vshrl.u32 %v180, 7
    %v182 = vsub.s32 %v179, %v181
    %v183 = vrot.slane %v146, %v182
    %v184 = vlaneseq
    %v185 = vshrl.u32 %v184, 7
    %v186 = vsub.s32 %v179, %v185
    %v187 = vrot.slane %v149, %v186
    %v188 = vlaneseq
    %v189 = vshrl.u32 %v188, 7
    %v190 = vsub.s32 %v179, %v189
    %v191 = vrot.slane %v152, %v190
    %v192 = vlaneseq
    %v193 = vshrl.u32 %v192, 7
    %v194 = vsub.s32 %v179, %v193
    %v195 = vrot.slane %v155, %v194
    %v196 = vlaneseq
    %v197 = vshrl.u32 %v196, 7
    %v198 = vsub.s32 %v179, %v197
    %v199 = vrot.slane %v158, %v198
    %v200 = vlaneseq
    %v201 = vshrl.u32 %v200, 7
    %v202 = vsub.s32 %v179, %v201
    %v203 = vrot.slane %v161, %v202
    %v204 = vlaneseq
    %v205 = vshrl.u32 %v204, 7
    %v206 = vsub.s32 %v179, %v205
    %v207 = vrot.slane %v164, %v206
    %v208 = vlaneseq
    %v209 = vshrl.u32 %v208, 7
    %v210 = vsub.s32 %v179, %v209
    %v211 = vrot.slane %v167, %v210
    %vm212 = vcmask 1041409
    %v213 = vsel %vm212, %v187, %v183
    %vm214 = vcmask 1042434
    %v215 = vsel %vm214, %v191, %v213
    %vm216 = vcmask 1043459
    %v217 = vsel %vm216, %v195, %v215
    %vm218 = vcmask 1044484
    %v219 = vsel %vm218, %v199, %v217
    %vm220 = vcmask 1045509
    %v221 = vsel %vm220, %v203, %v219
    %vm222 = vcmask 1046534
    %v223 = vsel %vm222, %v207, %v221
    %vm224 = vcmask 1047559
    %v225 = vsel %vm224, %v211, %v223
    %v227 = vsel %vm169, %v225, -inf
    %vm228 = vcmask 15360
    %v229 = vsel %vm228, %v227, -inf
    %v230 = vrot.slane %v229, 4
    %v231 = vmax.f32 %v229, %v230
    %v232 = vrot.slane %v231, 2
    %v233 = vmax.f32 %v231, %v232
    %v234 = vrot.slane %v233, 1
    %v235 = vmax.f32 %v233, %v234
    %v236 = vsub.f32 %v227, %v235
    %v237 = vmul.f32 %v236, 1.442695
    %v238 = vpow.pop %v237
    %v239 = vsel %vm228, %v238, 0.0
    %v240 = vrot.slane %v239, 4
    %v241 = vadd.f32 %v239, %v240
    %v242 = vrot.slane %v241, 2
    %v243 = vadd.f32 %v241, %v242
    %v244 = vrot.slane %v243, 1
    %v245 = vadd.f32 %v243, %v244
    %v246 = vrcp.pop %v245
    %v247 = vmul.f32 %v238, %v246
    %248 = vst.msk [vmem:[%s4] sm:$0xff] %vm228, %v247
    %v249 = vlaneseq
    %v250 = vshrl.u32 %v249, 7
    %v251 = vsub.s32 0, %v250
    %v252 = vrot.slane %v247, %v251
    %254 = vbcast.lane.b32.xlu0 %v252, 256
    %v255 = vpop.permute.xlu0 %254
    %v256 = vlaneseq
    %v257 = vshrl.u32 %v256, 7
    %v258 = vsub.s32 1, %v257
    %v259 = vrot.slane %v247, %v258
    %261 = vbcast.lane.b32.xlu0 %v259, 256
    %v262 = vpop.permute.xlu0 %261
    %v263 = vlaneseq
    %v264 = vshrl.u32 %v263, 7
    %v265 = vsub.s32 2, %v264
    %v266 = vrot.slane %v247, %v265
    %268 = vbcast.lane.b32.xlu0 %v266, 256
    %v269 = vpop.permute.xlu0 %268
    %v270 = vlaneseq
    %v271 = vshrl.u32 %v270, 7
    %v272 = vsub.s32 3, %v271
    %v273 = vrot.slane %v247, %v272
    %275 = vbcast.lane.b32.xlu0 %v273, 256
    %v276 = vpop.permute.xlu0 %275
    %v277 = vlaneseq
    %v278 = vshrl.u32 %v277, 7
    %v279 = vsub.s32 4, %v278
    %v280 = vrot.slane %v247, %v279
    %282 = vbcast.lane.b32.xlu0 %v280, 256
    %v283 = vpop.permute.xlu0 %282
    %v284 = vlaneseq
    %v285 = vshrl.u32 %v284, 7
    %v286 = vsub.s32 5, %v285
    %v287 = vrot.slane %v247, %v286
    %289 = vbcast.lane.b32.xlu0 %v287, 256
    %v290 = vpop.permute.xlu0 %289
    %v291 = vlaneseq
    %v292 = vshrl.u32 %v291, 7
    %v293 = vsub.s32 6, %v292
    %v294 = vrot.slane %v247, %v293
    %296 = vbcast.lane.b32.xlu0 %v294, 256
    %v297 = vpop.permute.xlu0 %296
    %v298 = vlaneseq
    %v299 = vshrl.u32 %v298, 7
    %v300 = vsub.s32 7, %v299
    %v301 = vrot.slane %v247, %v300
    %303 = vbcast.lane.b32.xlu0 %v301, 256
    %v304 = vpop.permute.xlu0 %303
    %v305 = vmul.f32 %v255, %v48
    %v306 = vmul.f32 %v262, %v49
    %v307 = vmul.f32 %v269, %v50
    %v308 = vmul.f32 %v276, %v51
    %v309 = vmul.f32 %v283, %v52
    %v310 = vmul.f32 %v290, %v53
    %v311 = vmul.f32 %v297, %v54
    %v312 = vmul.f32 %v304, %v55
    %v313 = vsel %vm143, %v305, 0.0
    %v314 = vsel %vm143, %v306, 0.0
    %v315 = vadd.f32 %v313, %v314
    %v316 = vsel %vm143, %v307, 0.0
    %v317 = vadd.f32 %v315, %v316
    %v318 = vsel %vm143, %v308, 0.0
    %v319 = vadd.f32 %v317, %v318
    %v320 = vsel %vm143, %v309, 0.0
    %v321 = vadd.f32 %v319, %v320
    %v322 = vsel %vm143, %v310, 0.0
    %v323 = vadd.f32 %v321, %v322
    %v324 = vsel %vm143, %v311, 0.0
    %v325 = vadd.f32 %v323, %v324
    %v326 = vsel %vm143, %v312, 0.0
    %v327 = vadd.f32 %v325, %v326
    %328 = vst.msk [vmem:[#allocation7] sm:$0x3] %vm143, %v327
    // Predicated region
    $region26: #{imagine_attn_forward.1} parent=1 // pred_check
      _
    $region27: #{imagine_attn_forward.1} parent=1 // pred_check_branch
      %330 = sbr.rel (0) target = $region29
    $region28: #{imagine_attn_forward.1} parent=1 // pred_region
      _
    $region29: #{imagine_attn_forward.1} parent=1 // pred_fallthru
      _
    // Predicated region
    $region30: #{imagine_attn_forward.1} parent=1 // pred_check
      _
    $region31: #{imagine_attn_forward.1} parent=1 // pred_check_branch
      %332 = sbr.rel (0) target = $region33
    $region32: #{imagine_attn_forward.1} parent=1 // pred_region
      %s334 = ssub.s32 32, 32
      %335 = vsyncadd [#allocation4], %s334
      %s337 = sshll.u32 [#allocation7], 4
      %s338 = int_to_ptr.vmem [resolvable:$true] %s337
      %340 = dma.vmem_to_hbm [thread:$0]  %s338, 32, %s5, [#allocation4]
    $region33: #{imagine_attn_forward.1} parent=1 // pred_fallthru
      _
    // Predicated region
    $region34: #{imagine_attn_forward.1} parent=1 // pred_check
      _
    $region35: #{imagine_attn_forward.1} parent=1 // pred_check_branch
      %342 = sbr.rel (0) target = $region37
    $region36: #{imagine_attn_forward.1} parent=1 // pred_region
      _
    $region37: #{imagine_attn_forward.1} parent=1 // pred_fallthru
      _
    // Predicated region
    $region38: #{imagine_attn_forward.1} parent=1 // pred_check
      _
    $region39: #{imagine_attn_forward.1} parent=1 // pred_check_branch
      %344 = sbr.rel (0) target = $region41
    $region40: #{imagine_attn_forward.1} parent=1 // pred_region
      %345 = dma.done [#allocation4], 32
    $region41: #{imagine_attn_forward.1} parent=1 // pred_fallthru
      _
    %346 = vsyncpa [#allocation3], 1
    %347 = vsyncpa [#allocation6], 1
    %348 = vsyncpa [#allocation4], 1

</llo_original>
